<compile_context>
chip_gen: v5e
topology: v5e:2x2
jax: 0.10.0
libtpu: 0.0.40
codegen_flags: <defaults>
</compile_context>

<pallas_src>
import functools

import jax
import jax.numpy as jnp
from jax.experimental import pallas as pl
from jax.experimental.pallas import tpu as pltpu


def _round_up(x: int, m: int) -> int:
    return ((x + m - 1) // m) * m


def _choose_tiling(B: int, tile_b: int):
    """Pick (tile, n_grid_steps) for the batch axis.

    Balances per-grid-step overhead (bigger tiles), batch-padding waste
    (tile ~= cdiv(B, n_steps) instead of padding to a full extra tile), and
    v7x megacore sharding (even grid length, >= 2 steps for large B).
    Tile is always a multiple of 8 sublanes.
    """
    tile_b = max(8, _round_up(tile_b, 8))
    B8 = _round_up(max(B, 1), 8)
    if B8 <= tile_b:
        # Whole batch fits in one tile.  Split into 2 steps only when the
        # batch is big enough that each half still amortizes the ~0.35us
        # per-step overhead (lets v7x run both TensorCores).
        n_steps = 2 if B8 > 1024 else 1
    else:
        n_steps = pl.cdiv(B, tile_b)
        if n_steps % 2:
            n_steps += 1          # even grid -> balanced megacore split
    tile = _round_up(pl.cdiv(B, n_steps), 8)
    n_steps = pl.cdiv(B, tile)    # rounding may collapse a step
    return tile, n_steps


def _actor_kernel(x_ref,
                  w1_ref, b1_ref,
                  w2_ref, b2_ref,
                  w3_ref, b3_ref,
                  w4_ref, b4_ref,
                  o_ref):
    """Whole 4-layer MLP for one batch tile, entirely in VMEM.

    Weights / streamed activations may be bf16 (MXU-native on every TPU
    generation); accumulation is forced to f32 via preferred_element_type and
    bias-add, ReLU and tanh are kept in f32.
    """
    cdt = w1_ref.dtype  # MXU input dtype (bf16 by default, f32 on exact path)

    h = jnp.dot(x_ref[...], w1_ref[...],
                preferred_element_type=jnp.float32) + b1_ref[...]
    h = jnp.maximum(h, 0.0)

    h = jnp.dot(h.astype(cdt), w2_ref[...],
                preferred_element_type=jnp.float32) + b2_ref[...]
    h = jnp.maximum(h, 0.0)

    h = jnp.dot(h.astype(cdt), w3_ref[...],
                preferred_element_type=jnp.float32) + b3_ref[...]
    h = jnp.maximum(h, 0.0)

    y = jnp.dot(h.astype(cdt), w4_ref[...],
                preferred_element_type=jnp.float32) + b4_ref[...]
    o_ref[...] = jnp.tanh(y).astype(o_ref.dtype)


@functools.partial(jax.jit, static_argnames=("tile_b", "exact"))
def shared_actor_forward(state, params, *, tile_b=1024, exact=False):
    """Pallas-backed forward pass of SharedActor.

    Args:
      state:  (B, obs_dim) batch of local observations.
      params: dict with w1..w4 stored (in_features, out_features) and
              b1..b4 stored (1, out_features).
      tile_b: target batch tile size (large tiles amortize the per-grid-step
              overhead; sweep 1024-4096 for very large B).
      exact:  if True, run pure f32 (bit-parity with the PyTorch module).
              Default False = bf16 weights+activations, f32 accumulation
              (note: this quantizes activations as well as weights).
    Returns:
      (B, act_dim) float32 actions in [-1, 1].
    """
    B, obs_dim = state.shape
    compute_dtype = jnp.float32 if exact else jnp.bfloat16
    out_dtype = jnp.float32 if exact else jnp.bfloat16
    out_itemsize = 4 if exact else 2

    w1 = params["w1"].astype(compute_dtype)
    w2 = params["w2"].astype(compute_dtype)
    w3 = params["w3"].astype(compute_dtype)
    w4 = params["w4"].astype(compute_dtype)
    b1 = params["b1"].astype(jnp.float32)
    b2 = params["b2"].astype(jnp.float32)
    b3 = params["b3"].astype(jnp.float32)
    b4 = params["b4"].astype(jnp.float32)
    hid = w1.shape[1]
    act_dim = w4.shape[1]

    # Lane-dense output: pad act_dim to a multiple of 128 lanes so the final
    # store is full-width (pad cols of w4/b4 are zero -> tanh(0)=0, sliced
    # off below).  On the bf16 path the output block is bf16, halving the
    # HBM writeback bytes the padding costs.
    act_pad = _round_up(act_dim, 128)
    if act_pad != act_dim:
        w4 = jnp.pad(w4, ((0, 0), (0, act_pad - act_dim)))
        b4 = jnp.pad(b4, ((0, 0), (0, act_pad - act_dim)))

    # Batch tiling (multiple of 8, waste-bounded, even grid for megacore).
    tile, n_steps = _choose_tiling(B, tile_b)
    b_pad = tile * n_steps
    x = state.astype(compute_dtype)
    if b_pad != B:
        x = jnp.pad(x, ((0, b_pad - B), (0, 0)))

    # Advisory cost so XLA can schedule/overlap around the custom call
    # (matters in the tiny-B acting regime where launch + the one-time
    # weight DMA dominate).
    param_bytes = sum(int(a.size) * a.dtype.itemsize
                      for a in (w1, b1, w2, b2, w3, b3, w4, b4))
    cost = pl.CostEstimate(
        flops=2 * b_pad * (obs_dim * hid + 2 * hid * hid + hid * act_pad),
        transcendentals=b_pad * act_pad,
        bytes_accessed=(int(x.size) * x.dtype.itemsize
                        + param_bytes
                        + b_pad * act_pad * out_itemsize),
    )

    # Parameters: whole-array VMEM residents -> staged into VMEM once before
    # the grid loop (no per-step DMA descriptors / double-buffering).
    vmem_full = pl.BlockSpec(memory_space=pltpu.MemorySpace.VMEM)

    out = pl.pallas_call(
        _actor_kernel,
        out_shape=jax.ShapeDtypeStruct((b_pad, act_pad), out_dtype),
        grid=(n_steps,),
        in_specs=[
            pl.BlockSpec((tile, obs_dim), lambda i: (i, 0)),  # state tile
            vmem_full, vmem_full,   # w1, b1
            vmem_full, vmem_full,   # w2, b2
            vmem_full, vmem_full,   # w3, b3
            vmem_full, vmem_full,   # w4, b4
        ],
        out_specs=pl.BlockSpec((tile, act_pad), lambda i: (i, 0)),
        compiler_params=pltpu.CompilerParams(
            dimension_semantics=("parallel",),  # batch axis shards on v7x megacore
        ),
        cost_estimate=cost,
    )(x, w1, b1, w2, b2, w3, b3, w4, b4)

    return out[:B, :act_dim].astype(jnp.float32)


def init_shared_actor_params(key, obs_dim, act_dim, hidden_dim=128):
    """Deterministic init mimicking nn.Linear default (U(-1/sqrt(fan_in), +)).

    Weights stored (in_features, out_features) so the kernel computes x @ W
    (equivalent to PyTorch's x @ W.T with its (out, in) storage).  Params are
    stored f32; the wrapper casts weights per compute path.
    """
    dims = [(obs_dim, hidden_dim),
            (hidden_dim, hidden_dim),
            (hidden_dim, hidden_dim),
            (hidden_dim, act_dim)]
    params = {}
    for idx, (fan_in, fan_out) in enumerate(dims, start=1):
        key, kw, kb = jax.random.split(key, 3)
        bound = 1.0 / jnp.sqrt(jnp.float32(fan_in))
        params[f"w{idx}"] = jax.random.uniform(
            kw, (fan_in, fan_out), jnp.float32, -bound, bound)
        params[f"b{idx}"] = jax.random.uniform(
            kb, (1, fan_out), jnp.float32, -bound, bound)
    return params


def _reference_forward(state, params):
    """Plain-JAX f32 reference of the same MLP (for sanity checks)."""
    w = {k: v.astype(jnp.float32) for k, v in params.items()}
    h = jnp.maximum(state @ w["w1"] + w["b1"], 0.0)
    h = jnp.maximum(h @ w["w2"] + w["b2"], 0.0)
    h = jnp.maximum(h @ w["w3"] + w["b3"], 0.0)
    return jnp.tanh(h @ w["w4"] + w["b4"])


if __name__ == "__main__":
    key = jax.random.PRNGKey(0)
    kp, kx = jax.random.split(key)

    batch = 64
    obs_dim = 16
    act_dim = 8
    hidden_dim = 128  # module default

    params = init_shared_actor_params(kp, obs_dim, act_dim, hidden_dim)
    state = jax.random.normal(kx, (batch, obs_dim), dtype=jnp.float32)
    ref = _reference_forward(state, params)

    # --- default bf16 perf path (single tile) ---
    out = jax.block_until_ready(shared_actor_forward(state, params))
    assert out.shape == (batch, act_dim)
    assert jnp.max(jnp.abs(out - ref)) < 7.5e-2  # bf16 weights+acts tolerance

    # --- bf16 path, multi-step grid + bf16 output writeback ---
    out_b = jax.block_until_ready(shared_actor_forward(state, params, tile_b=32))
    assert out_b.shape == (batch, act_dim)
    assert jnp.max(jnp.abs(out_b - ref)) < 7.5e-2

    # --- exact f32 parity path, multi-step grid (tile_b=32 -> grid=(2,)) ---
    out_e = jax.block_until_ready(
        shared_actor_forward(state, params, tile_b=32, exact=True))
    assert out_e.shape == (batch, act_dim)
    assert jnp.max(jnp.abs(out_e - ref)) < 1e-5

    # --- ragged batch (exercises batch padding + waste-bounded tile) ---
    out_r = jax.block_until_ready(
        shared_actor_forward(state[:50], params, tile_b=32, exact=True))
    assert out_r.shape == (50, act_dim)
    assert jnp.max(jnp.abs(out_r - ref[:50])) < 1e-5

    print("KERNEL_OK")
</pallas_src>

<mosaic_0001>
module attributes {stable_mosaic.version = 11 : i64} {
  func.func @_actor_kernel(%arg0: i32, %arg1: memref<64x16xbf16, #tpu.memory_space<vmem>>, %arg2: memref<16x128xbf16, #tpu.memory_space<vmem>>, %arg3: memref<1x128xf32, #tpu.memory_space<vmem>>, %arg4: memref<128x128xbf16, #tpu.memory_space<vmem>>, %arg5: memref<1x128xf32, #tpu.memory_space<vmem>>, %arg6: memref<128x128xbf16, #tpu.memory_space<vmem>>, %arg7: memref<1x128xf32, #tpu.memory_space<vmem>>, %arg8: memref<128x128xbf16, #tpu.memory_space<vmem>>, %arg9: memref<1x128xf32, #tpu.memory_space<vmem>>, %arg10: memref<64x128xbf16, #tpu.memory_space<vmem>>) attributes {dimension_semantics = [#tpu.dimension_semantics<parallel>], iteration_bounds = array<i64: 1>, scalar_prefetch = 0 : i64, scratch_operands = 0 : i64, tpu.core_type = #tpu.core_type<tc>, window_params = [{transform_indices = @transform_0, window_bounds = array<i64: 64, 16>}, {pipeline_mode = #tpu.pipeline_mode<synchronous>, transform_indices = @transform_1, window_bounds = array<i64: 16, 128>}, {pipeline_mode = #tpu.pipeline_mode<synchronous>, transform_indices = @transform_2, window_bounds = array<i64: 1, 128>}, {pipeline_mode = #tpu.pipeline_mode<synchronous>, transform_indices = @transform_3, window_bounds = array<i64: 128, 128>}, {pipeline_mode = #tpu.pipeline_mode<synchronous>, transform_indices = @transform_4, window_bounds = array<i64: 1, 128>}, {pipeline_mode = #tpu.pipeline_mode<synchronous>, transform_indices = @transform_5, window_bounds = array<i64: 128, 128>}, {pipeline_mode = #tpu.pipeline_mode<synchronous>, transform_indices = @transform_6, window_bounds = array<i64: 1, 128>}, {pipeline_mode = #tpu.pipeline_mode<synchronous>, transform_indices = @transform_7, window_bounds = array<i64: 128, 128>}, {pipeline_mode = #tpu.pipeline_mode<synchronous>, transform_indices = @transform_8, window_bounds = array<i64: 1, 128>}, {transform_indices = @transform_9, window_bounds = array<i64: 64, 128>}]} {
    %c0 = arith.constant 0 : index
    %c0_0 = arith.constant 0 : index
    %0 = vector.load %arg1[%c0, %c0_0] : memref<64x16xbf16, #tpu.memory_space<vmem>>, vector<64x16xbf16>
    %c0_1 = arith.constant 0 : index
    %c0_2 = arith.constant 0 : index
    %1 = vector.load %arg2[%c0_1, %c0_2] : memref<16x128xbf16, #tpu.memory_space<vmem>>, vector<16x128xbf16>
    %cst = arith.constant dense<0.000000e+00> : vector<64x128xf32>
    %2 = tpu.matmul %0, %1, %cst {dimension_numbers = #tpu.dot_dimension_numbers<[1], [0], [0], [1], [0, 0, 1, 1], [], []>} : vector<64x16xbf16>, vector<16x128xbf16>, vector<64x128xf32> -> vector<64x128xf32>
    %c0_3 = arith.constant 0 : index
    %c0_4 = arith.constant 0 : index
    %3 = vector.load %arg3[%c0_3, %c0_4] : memref<1x128xf32, #tpu.memory_space<vmem>>, vector<1x128xf32>
    %4 = vector.broadcast %3 : vector<1x128xf32> to vector<64x128xf32>
    %5 = arith.addf %2, %4 : vector<64x128xf32>
    %cst_5 = arith.constant 0.000000e+00 : f32
    %6 = vector.broadcast %cst_5 : f32 to vector<64x128xf32>
    %7 = arith.maximumf %5, %6 : vector<64x128xf32>
    %8 = arith.truncf %7 : vector<64x128xf32> to vector<64x128xbf16>
    %c0_6 = arith.constant 0 : index
    %c0_7 = arith.constant 0 : index
    %9 = vector.load %arg4[%c0_6, %c0_7] : memref<128x128xbf16, #tpu.memory_space<vmem>>, vector<128x128xbf16>
    %cst_8 = arith.constant dense<0.000000e+00> : vector<64x128xf32>
    %10 = tpu.matmul %8, %9, %cst_8 {dimension_numbers = #tpu.dot_dimension_numbers<[1], [0], [0], [1], [0, 0, 1, 1], [], []>} : vector<64x128xbf16>, vector<128x128xbf16>, vector<64x128xf32> -> vector<64x128xf32>
    %c0_9 = arith.constant 0 : index
    %c0_10 = arith.constant 0 : index
    %11 = vector.load %arg5[%c0_9, %c0_10] : memref<1x128xf32, #tpu.memory_space<vmem>>, vector<1x128xf32>
    %12 = vector.broadcast %11 : vector<1x128xf32> to vector<64x128xf32>
    %13 = arith.addf %10, %12 : vector<64x128xf32>
    %cst_11 = arith.constant 0.000000e+00 : f32
    %14 = vector.broadcast %cst_11 : f32 to vector<64x128xf32>
    %15 = arith.maximumf %13, %14 : vector<64x128xf32>
    %16 = arith.truncf %15 : vector<64x128xf32> to vector<64x128xbf16>
    %c0_12 = arith.constant 0 : index
    %c0_13 = arith.constant 0 : index
    %17 = vector.load %arg6[%c0_12, %c0_13] : memref<128x128xbf16, #tpu.memory_space<vmem>>, vector<128x128xbf16>
    %cst_14 = arith.constant dense<0.000000e+00> : vector<64x128xf32>
    %18 = tpu.matmul %16, %17, %cst_14 {dimension_numbers = #tpu.dot_dimension_numbers<[1], [0], [0], [1], [0, 0, 1, 1], [], []>} : vector<64x128xbf16>, vector<128x128xbf16>, vector<64x128xf32> -> vector<64x128xf32>
    %c0_15 = arith.constant 0 : index
    %c0_16 = arith.constant 0 : index
    %19 = vector.load %arg7[%c0_15, %c0_16] : memref<1x128xf32, #tpu.memory_space<vmem>>, vector<1x128xf32>
    %20 = vector.broadcast %19 : vector<1x128xf32> to vector<64x128xf32>
    %21 = arith.addf %18, %20 : vector<64x128xf32>
    %cst_17 = arith.constant 0.000000e+00 : f32
    %22 = vector.broadcast %cst_17 : f32 to vector<64x128xf32>
    %23 = arith.maximumf %21, %22 : vector<64x128xf32>
    %24 = arith.truncf %23 : vector<64x128xf32> to vector<64x128xbf16>
    %c0_18 = arith.constant 0 : index
    %c0_19 = arith.constant 0 : index
    %25 = vector.load %arg8[%c0_18, %c0_19] : memref<128x128xbf16, #tpu.memory_space<vmem>>, vector<128x128xbf16>
    %cst_20 = arith.constant dense<0.000000e+00> : vector<64x128xf32>
    %26 = tpu.matmul %24, %25, %cst_20 {dimension_numbers = #tpu.dot_dimension_numbers<[1], [0], [0], [1], [0, 0, 1, 1], [], []>} : vector<64x128xbf16>, vector<128x128xbf16>, vector<64x128xf32> -> vector<64x128xf32>
    %c0_21 = arith.constant 0 : index
    %c0_22 = arith.constant 0 : index
    %27 = vector.load %arg9[%c0_21, %c0_22] : memref<1x128xf32, #tpu.memory_space<vmem>>, vector<1x128xf32>
    %28 = vector.broadcast %27 : vector<1x128xf32> to vector<64x128xf32>
    %29 = arith.addf %26, %28 : vector<64x128xf32>
    %30 = math.tanh %29 : vector<64x128xf32>
    %31 = arith.truncf %30 : vector<64x128xf32> to vector<64x128xbf16>
    %c0_23 = arith.constant 0 : index
    %c0_24 = arith.constant 0 : index
    %32 = vector.load %arg10[%c0_23, %c0_24] : memref<64x128xbf16, #tpu.memory_space<vmem>>, vector<64x128xbf16>
    tpu.vector_store %arg10[%c0_23, %c0_24], %31 {strides = array<i32>} : memref<64x128xbf16, #tpu.memory_space<vmem>>, vector<64x128xbf16>,
    return
  }
  func.func @transform_0(%arg0: i32) -> (i32, i32) {
    %c0_i32 = arith.constant 0 : i32
    %c0_i32_0 = arith.constant 0 : i32
    return %arg0, %c0_i32 : i32, i32
  }
  func.func @transform_1(%arg0: i32) -> (i32, i32) {
    %c0_i32 = arith.constant 0 : i32
    %c0_i32_0 = arith.constant 0 : i32
    %c0_i32_1 = arith.constant 0 : i32
    return %c0_i32, %c0_i32_0 : i32, i32
  }
  func.func @transform_2(%arg0: i32) -> (i32, i32) {
    %c0_i32 = arith.constant 0 : i32
    %c0_i32_0 = arith.constant 0 : i32
    %c0_i32_1 = arith.constant 0 : i32
    return %c0_i32, %c0_i32_0 : i32, i32
  }
  func.func @transform_3(%arg0: i32) -> (i32, i32) {
    %c0_i32 = arith.constant 0 : i32
    %c0_i32_0 = arith.constant 0 : i32
    %c0_i32_1 = arith.constant 0 : i32
    return %c0_i32, %c0_i32_0 : i32, i32
  }
  func.func @transform_4(%arg0: i32) -> (i32, i32) {
    %c0_i32 = arith.constant 0 : i32
    %c0_i32_0 = arith.constant 0 : i32
    %c0_i32_1 = arith.constant 0 : i32
    return %c0_i32, %c0_i32_0 : i32, i32
  }
  func.func @transform_5(%arg0: i32) -> (i32, i32) {
    %c0_i32 = arith.constant 0 : i32
    %c0_i32_0 = arith.constant 0 : i32
    %c0_i32_1 = arith.constant 0 : i32
    return %c0_i32, %c0_i32_0 : i32, i32
  }
  func.func @transform_6(%arg0: i32) -> (i32, i32) {
    %c0_i32 = arith.constant 0 : i32
    %c0_i32_0 = arith.constant 0 : i32
    %c0_i32_1 = arith.constant 0 : i32
    return %c0_i32, %c0_i32_0 : i32, i32
  }
  func.func @transform_7(%arg0: i32) -> (i32, i32) {
    %c0_i32 = arith.constant 0 : i32
    %c0_i32_0 = arith.constant 0 : i32
    %c0_i32_1 = arith.constant 0 : i32
    return %c0_i32, %c0_i32_0 : i32, i32
  }
  func.func @transform_8(%arg0: i32) -> (i32, i32) {
    %c0_i32 = arith.constant 0 : i32
    %c0_i32_0 = arith.constant 0 : i32
    %c0_i32_1 = arith.constant 0 : i32
    return %c0_i32, %c0_i32_0 : i32, i32
  }
  func.func @transform_9(%arg0: i32) -> (i32, i32) {
    %c0_i32 = arith.constant 0 : i32
    %c0_i32_0 = arith.constant 0 : i32
    return %arg0, %c0_i32 : i32, i32
  }
}

</mosaic_0001>

<llo_original>
// kernel: shared_actor_forward.1
$region0: #{shared_actor_forward.1}
  #allocation0 [shape = 'u32[]', space=smem, size = 0x4, offset = 0x4, fixed_abs, tag = 'smem constant byte address 0x4 - core index']
  #allocation1 [shape = 'u32[72,128]{1,0:T(1,128)}', space=vmem, size = 0x9000, scoped, tag = 'internal scratch']
  %s0 = inlined_call_operand.vmem [shape: bf16[64,16], index: 0, kind: input, shape index: {}]
  %s1 = inlined_call_operand.vmem [shape: bf16[16,128], index: 1, kind: input, shape index: {}]
  %s2 = inlined_call_operand.vmem [shape: f32[1,128], index: 2, kind: input, shape index: {}]
  %s3 = inlined_call_operand.vmem [shape: bf16[128,128], index: 3, kind: input, shape index: {}]
  %s4 = inlined_call_operand.vmem [shape: f32[1,128], index: 4, kind: input, shape index: {}]
  %s5 = inlined_call_operand.vmem [shape: bf16[128,128], index: 5, kind: input, shape index: {}]
  %s6 = inlined_call_operand.vmem [shape: f32[1,128], index: 6, kind: input, shape index: {}]
  %s7 = inlined_call_operand.vmem [shape: bf16[128,128], index: 7, kind: input, shape index: {}]
  %s8 = inlined_call_operand.vmem [shape: f32[1,128], index: 8, kind: input, shape index: {}]
  %s9 = inlined_call_operand.vmem [shape: bf16[64,128], index: 9, kind: output, shape index: {}]
  %s10 = sld [smem:[#allocation0]]
  $region46: #{shared_actor_forward.1} parent=0
    _
  %s12 = ssub.s32 1, %s10
  %s13 = scalar_select 0, %s12, %s10
  // Predicated region
  $region2: #{shared_actor_forward.1} parent=0 // pred_check
    _
  $region3: #{shared_actor_forward.1} parent=0 // pred_check_branch
    %15 = sbr.rel (0) target = $region5
  $region4: #{shared_actor_forward.1} parent=0 // pred_region
    _
  $region5: #{shared_actor_forward.1} parent=0 // pred_fallthru
    _
  // Predicated region
  $region6: #{shared_actor_forward.1} parent=0 // pred_check
    _
  $region7: #{shared_actor_forward.1} parent=0 // pred_check_branch
    %17 = sbr.rel (0) target = $region9
  $region8: #{shared_actor_forward.1} parent=0 // pred_region
    _
  $region9: #{shared_actor_forward.1} parent=0 // pred_fallthru
    _
  // Predicated region
  $region10: #{shared_actor_forward.1} parent=0 // pred_check
    _
  $region11: #{shared_actor_forward.1} parent=0 // pred_check_branch
    %19 = sbr.rel (0) target = $region13
  $region12: #{shared_actor_forward.1} parent=0 // pred_region
    _
  $region13: #{shared_actor_forward.1} parent=0 // pred_fallthru
    _
  // Predicated region
  $region14: #{shared_actor_forward.1} parent=0 // pred_check
    _
  $region15: #{shared_actor_forward.1} parent=0 // pred_check_branch
    %21 = sbr.rel (0) target = $region17
  $region16: #{shared_actor_forward.1} parent=0 // pred_region
    _
  $region17: #{shared_actor_forward.1} parent=0 // pred_fallthru
    _
  // Predicated region
  $region18: #{shared_actor_forward.1} parent=0 // pred_check
    _
  $region19: #{shared_actor_forward.1} parent=0 // pred_check_branch
    %23 = sbr.rel (0) target = $region21
  $region20: #{shared_actor_forward.1} parent=0 // pred_region
    _
  $region21: #{shared_actor_forward.1} parent=0 // pred_fallthru
    _
  // Predicated region
  $region22: #{shared_actor_forward.1} parent=0 // pred_check
    _
  $region23: #{shared_actor_forward.1} parent=0 // pred_check_branch
    %25 = sbr.rel (0) target = $region25
  $region24: #{shared_actor_forward.1} parent=0 // pred_region
    _
  $region25: #{shared_actor_forward.1} parent=0 // pred_fallthru
    _
  // Predicated region
  $region26: #{shared_actor_forward.1} parent=0 // pred_check
    _
  $region27: #{shared_actor_forward.1} parent=0 // pred_check_branch
    %27 = sbr.rel (0) target = $region29
  $region28: #{shared_actor_forward.1} parent=0 // pred_region
    _
  $region29: #{shared_actor_forward.1} parent=0 // pred_fallthru
    _
  // Predicated region
  $region30: #{shared_actor_forward.1} parent=0 // pred_check
    _
  $region31: #{shared_actor_forward.1} parent=0 // pred_check_branch
    %29 = sbr.rel (0) target = $region33
  $region32: #{shared_actor_forward.1} parent=0 // pred_region
    _
  $region33: #{shared_actor_forward.1} parent=0 // pred_fallthru
    _
  // Predicated region
  $region34: #{shared_actor_forward.1} parent=0 // pred_check
    _
  $region35: #{shared_actor_forward.1} parent=0 // pred_check_branch
    %31 = sbr.rel (0) target = $region37
  $region36: #{shared_actor_forward.1} parent=0 // pred_region
    _
  $region37: #{shared_actor_forward.1} parent=0 // pred_fallthru
    _
  %v33 = vld [vmem:[%s0] sm:$0xf]
  %v34 = vld [vmem:[%s0 + $0x4] sm:$0xf]
  %v35 = vld [vmem:[%s0 + $0x8] sm:$0xf]
  %v36 = vld [vmem:[%s0 + $0xc] sm:$0xf]
  %v37 = vld [vmem:[%s0 + $0x10] sm:$0xf]
  %v38 = vld [vmem:[%s0 + $0x14] sm:$0xf]
  %v39 = vld [vmem:[%s0 + $0x18] sm:$0xf]
  %v40 = vld [vmem:[%s0 + $0x1c] sm:$0xf]
  %v41 = vld [vmem:[%s1] sm:$0xf]
  %v42 = vld [vmem:[%s1 + $0x4] sm:$0xf]
  %v43 = vld [vmem:[%s2] sm:$0x1]
  %v45 = vperm.slane %v43, 0
  %v55 = vunpack.c.l.b16 %v33
  %v56 = vunpack.c.l.b16 %v34
  %v57 = vunpack.c.l.b16 %v35
  %v58 = vunpack.c.l.b16 %v36
  %v59 = vunpack.c.l.b16 %v37
  %v60 = vunpack.c.l.b16 %v38
  %v61 = vunpack.c.l.b16 %v39
  %v62 = vunpack.c.l.b16 %v40
  %v63 = vpack.c.b16 %v56, %v55
  %v64 = vpack.c.b16 %v58, %v57
  %v65 = vpack.c.b16 %v60, %v59
  %v66 = vpack.c.b16 %v62, %v61
  %v69 = vunpack.c.l.b16 %v41
  %v70 = vunpack.c.l.b16 %v42
  %v71 = vpack.c.b16 %v70, %v69
  %vm73 = vcmask 130048
  %v75 = vsel %vm73, %v63, 0
  %v78 = vsel %vm73, %v64, 0
  %v81 = vsel %vm73, %v65, 0
  %v84 = vsel %vm73, %v66, 0
  %86 = vmatpush.bf16.msra.mxu0 0
  %87 = vmatpush.bf16.msra.mxu0 0
  %88 = vmatpush.bf16.msra.mxu0 0
  %89 = vmatpush.bf16.msra.mxu0 0
  %90 = vmatpush.bf16.msra.mxu0 0
  %91 = vmatpush.bf16.msra.mxu0 0
  %92 = vmatpush.bf16.msra.mxu0 0
  %93 = vmatpush.bf16.msra.mxu0 %v71
  %94 = vmatmul.bf16.gmra.mxu0 %v75
  %v95 = vpop.f32.mrf.mxu0
  %v96 = vadd.f32 %v45, %v95
  %v97 = vpop.f32.mrf.mxu0
  %v98 = vadd.f32 %v45, %v97
  %99 = vmatmul.bf16.gmra.mxu0 %v78
  %v100 = vpop.f32.mrf.mxu0
  %v101 = vadd.f32 %v45, %v100
  %v102 = vpop.f32.mrf.mxu0
  %v103 = vadd.f32 %v45, %v102
  %104 = vmatmul.bf16.gmra.mxu0 %v81
  %v105 = vpop.f32.mrf.mxu0
  %v106 = vadd.f32 %v45, %v105
  %v107 = vpop.f32.mrf.mxu0
  %v108 = vadd.f32 %v45, %v107
  %109 = vmatmul.bf16.gmra.mxu0 %v84
  %v110 = vpop.f32.mrf.mxu0
  %v111 = vadd.f32 %v45, %v110
  %v112 = vpop.f32.mrf.mxu0
  %v113 = vadd.f32 %v45, %v112
  %114 = vdwg.mxu0
  %v115 = vmax.f32 %v96, 0.0
  %v116 = vmax.f32 %v98, 0.0
  %v117 = vmax.f32 %v101, 0.0
  %v118 = vmax.f32 %v103, 0.0
  %v119 = vmax.f32 %v106, 0.0
  %v120 = vmax.f32 %v108, 0.0
  %v121 = vmax.f32 %v111, 0.0
  %v122 = vmax.f32 %v113, 0.0
  %v123 = vpack.c.bf16 %v116, %v115
  %v124 = vpack.c.bf16 %v118, %v117
  %v125 = vpack.c.bf16 %v120, %v119
  %v126 = vpack.c.bf16 %v122, %v121
  %v127 = vld [vmem:[%s3] sm:$0xf]
  %v128 = vld [vmem:[%s3 + $0x4] sm:$0xf]
  %v129 = vld [vmem:[%s3 + $0x8] sm:$0xf]
  %v130 = vld [vmem:[%s3 + $0xc] sm:$0xf]
  %v131 = vld [vmem:[%s3 + $0x10] sm:$0xf]
  %v132 = vld [vmem:[%s3 + $0x14] sm:$0xf]
  %v133 = vld [vmem:[%s3 + $0x18] sm:$0xf]
  %v134 = vld [vmem:[%s3 + $0x1c] sm:$0xf]
  %v135 = vld [vmem:[%s3 + $0x20] sm:$0xf]
  %v136 = vld [vmem:[%s3 + $0x24] sm:$0xf]
  %v137 = vld [vmem:[%s3 + $0x28] sm:$0xf]
  %v138 = vld [vmem:[%s3 + $0x2c] sm:$0xf]
  %v139 = vld [vmem:[%s3 + $0x30] sm:$0xf]
  %v140 = vld [vmem:[%s3 + $0x34] sm:$0xf]
  %v141 = vld [vmem:[%s3 + $0x38] sm:$0xf]
  %v142 = vld [vmem:[%s3 + $0x3c] sm:$0xf]
  %v143 = vld [vmem:[%s4] sm:$0x1]
  %v145 = vperm.slane %v143, 0
  %v163 = vunpack.c.l.b16 %v127
  %v164 = vunpack.c.l.b16 %v128
  %v165 = vunpack.c.l.b16 %v129
  %v166 = vunpack.c.l.b16 %v130
  %v167 = vunpack.c.l.b16 %v131
  %v168 = vunpack.c.l.b16 %v132
  %v169 = vunpack.c.l.b16 %v133
  %v170 = vunpack.c.l.b16 %v134
  %v171 = vunpack.c.l.b16 %v135
  %v172 = vunpack.c.l.b16 %v136
  %v173 = vunpack.c.l.b16 %v137
  %v174 = vunpack.c.l.b16 %v138
  %v175 = vunpack.c.l.b16 %v139
  %v176 = vunpack.c.l.b16 %v140
  %v177 = vunpack.c.l.b16 %v141
  %v178 = vunpack.c.l.b16 %v142
  %v179 = vpack.c.b16 %v164, %v163
  %v180 = vpack.c.b16 %v166, %v165
  %v181 = vpack.c.b16 %v168, %v167
  %v182 = vpack.c.b16 %v170, %v169
  %v183 = vpack.c.b16 %v172, %v171
  %v184 = vpack.c.b16 %v174, %v173
  %v185 = vpack.c.b16 %v176, %v175
  %v186 = vpack.c.b16 %v178, %v177
  %195 = vmatpush.bf16.msra.mxu0 %v186
  %196 = vmatpush.bf16.msra.mxu0 %v185
  %197 = vmatpush.bf16.msra.mxu0 %v184
  %198 = vmatpush.bf16.msra.mxu0 %v183
  %199 = vmatpush.bf16.msra.mxu0 %v182
  %200 = vmatpush.bf16.msra.mxu0 %v181
  %201 = vmatpush.bf16.msra.mxu0 %v180
  %202 = vmatpush.bf16.msra.mxu0 %v179
  %203 = vmatmul.bf16.gmra.mxu0 %v123
  %v204 = vpop.f32.mrf.mxu0
  %v205 = vadd.f32 %v145, %v204
  %v206 = vpop.f32.mrf.mxu0
  %v207 = vadd.f32 %v145, %v206
  %208 = vmatmul.bf16.gmra.mxu0 %v124
  %v209 = vpop.f32.mrf.mxu0
  %v210 = vadd.f32 %v145, %v209
  %v211 = vpop.f32.mrf.mxu0
  %v212 = vadd.f32 %v145, %v211
  %213 = vmatmul.bf16.gmra.mxu0 %v125
  %v214 = vpop.f32.mrf.mxu0
  %v215 = vadd.f32 %v145, %v214
  %v216 = vpop.f32.mrf.mxu0
  %v217 = vadd.f32 %v145, %v216
  %218 = vmatmul.bf16.gmra.mxu0 %v126
  %v219 = vpop.f32.mrf.mxu0
  %v220 = vadd.f32 %v145, %v219
  %v221 = vpop.f32.mrf.mxu0
  %v222 = vadd.f32 %v145, %v221
  %223 = vdwg.mxu0
  %v224 = vmax.f32 %v205, 0.0
  %v225 = vmax.f32 %v207, 0.0
  %v226 = vmax.f32 %v210, 0.0
  %v227 = vmax.f32 %v212, 0.0
  %v228 = vmax.f32 %v215, 0.0
  %v229 = vmax.f32 %v217, 0.0
  %v230 = vmax.f32 %v220, 0.0
  %v231 = vmax.f32 %v222, 0.0
  %v232 = vpack.c.bf16 %v225, %v224
  %v233 = vpack.c.bf16 %v227, %v226
  %v234 = vpack.c.bf16 %v229, %v228
  %v235 = vpack.c.bf16 %v231, %v230
  %v236 = vld [vmem:[%s5] sm:$0xf]
  %v237 = vld [vmem:[%s5 + $0x4] sm:$0xf]
  %v238 = vld [vmem:[%s5 + $0x8] sm:$0xf]
  %v239 = vld [vmem:[%s5 + $0xc] sm:$0xf]
  %v240 = vld [vmem:[%s5 + $0x10] sm:$0xf]
  %v241 = vld [vmem:[%s5 + $0x14] sm:$0xf]
  %v242 = vld [vmem:[%s5 + $0x18] sm:$0xf]
  %v243 = vld [vmem:[%s5 + $0x1c] sm:$0xf]
  %v244 = vld [vmem:[%s5 + $0x20] sm:$0xf]
  %v245 = vld [vmem:[%s5 + $0x24] sm:$0xf]
  %v246 = vld [vmem:[%s5 + $0x28] sm:$0xf]
  %v247 = vld [vmem:[%s5 + $0x2c] sm:$0xf]
  %v248 = vld [vmem:[%s5 + $0x30] sm:$0xf]
  %v249 = vld [vmem:[%s5 + $0x34] sm:$0xf]
  %v250 = vld [vmem:[%s5 + $0x38] sm:$0xf]
  %v251 = vld [vmem:[%s5 + $0x3c] sm:$0xf]
  %v252 = vld [vmem:[%s6] sm:$0x1]
  %v254 = vperm.slane %v252, 0
  %v272 = vunpack.c.l.b16 %v236
  %v273 = vunpack.c.l.b16 %v237
  %v274 = vunpack.c.l.b16 %v238
  %v275 = vunpack.c.l.b16 %v239
  %v276 = vunpack.c.l.b16 %v240
  %v277 = vunpack.c.l.b16 %v241
  %v278 = vunpack.c.l.b16 %v242
  %v279 = vunpack.c.l.b16 %v243
  %v280 = vunpack.c.l.b16 %v244
  %v281 = vunpack.c.l.b16 %v245
  %v282 = vunpack.c.l.b16 %v246
  %v283 = vunpack.c.l.b16 %v247
  %v284 = vunpack.c.l.b16 %v248
  %v285 = vunpack.c.l.b16 %v249
  %v286 = vunpack.c.l.b16 %v250
  %v287 = vunpack.c.l.b16 %v251
  %v288 = vpack.c.b16 %v273, %v272
  %v289 = vpack.c.b16 %v275, %v274
  %v290 = vpack.c.b16 %v277, %v276
  %v291 = vpack.c.b16 %v279, %v278
  %v292 = vpack.c.b16 %v281, %v280
  %v293 = vpack.c.b16 %v283, %v282
  %v294 = vpack.c.b16 %v285, %v284
  %v295 = vpack.c.b16 %v287, %v286
  %304 = vmatpush.bf16.msra.mxu0 %v295
  %305 = vmatpush.bf16.msra.mxu0 %v294
  %306 = vmatpush.bf16.msra.mxu0 %v293
  %307 = vmatpush.bf16.msra.mxu0 %v292
  %308 = vmatpush.bf16.msra.mxu0 %v291
  %309 = vmatpush.bf16.msra.mxu0 %v290
  %310 = vmatpush.bf16.msra.mxu0 %v289
  %311 = vmatpush.bf16.msra.mxu0 %v288
  %312 = vmatmul.bf16.gmra.mxu0 %v232
  %v313 = vpop.f32.mrf.mxu0
  %v314 = vadd.f32 %v254, %v313
  %v315 = vpop.f32.mrf.mxu0
  %v316 = vadd.f32 %v254, %v315
  %317 = vmatmul.bf16.gmra.mxu0 %v233
  %v318 = vpop.f32.mrf.mxu0
  %v319 = vadd.f32 %v254, %v318
  %v320 = vpop.f32.mrf.mxu0
  %v321 = vadd.f32 %v254, %v320
  %322 = vmatmul.bf16.gmra.mxu0 %v234
  %v323 = vpop.f32.mrf.mxu0
  %v324 = vadd.f32 %v254, %v323
  %v325 = vpop.f32.mrf.mxu0
  %v326 = vadd.f32 %v254, %v325
  %327 = vmatmul.bf16.gmra.mxu0 %v235
  %v328 = vpop.f32.mrf.mxu0
  %v329 = vadd.f32 %v254, %v328
  %v330 = vpop.f32.mrf.mxu0
  %v331 = vadd.f32 %v254, %v330
  %332 = vdwg.mxu0
  %v333 = vmax.f32 %v314, 0.0
  %v334 = vmax.f32 %v316, 0.0
  %v335 = vmax.f32 %v319, 0.0
  %v336 = vmax.f32 %v321, 0.0
  %v337 = vmax.f32 %v324, 0.0
  %v338 = vmax.f32 %v326, 0.0
  %v339 = vmax.f32 %v329, 0.0
  %v340 = vmax.f32 %v331, 0.0
  %v341 = vpack.c.bf16 %v334, %v333
  %v342 = vpack.c.bf16 %v336, %v335
  %v343 = vpack.c.bf16 %v338, %v337
  %v344 = vpack.c.bf16 %v340, %v339
  %v345 = vld [vmem:[%s7] sm:$0xf]
  %v346 = vld [vmem:[%s7 + $0x4] sm:$0xf]
  %v347 = vld [vmem:[%s7 + $0x8] sm:$0xf]
  %v348 = vld [vmem:[%s7 + $0xc] sm:$0xf]
  %v349 = vld [vmem:[%s7 + $0x10] sm:$0xf]
  %v350 = vld [vmem:[%s7 + $0x14] sm:$0xf]
  %v351 = vld [vmem:[%s7 + $0x18] sm:$0xf]
  %v352 = vld [vmem:[%s7 + $0x1c] sm:$0xf]
  %v353 = vld [vmem:[%s7 + $0x20] sm:$0xf]
  %v354 = vld [vmem:[%s7 + $0x24] sm:$0xf]
  %v355 = vld [vmem:[%s7 + $0x28] sm:$0xf]
  %v356 = vld [vmem:[%s7 + $0x2c] sm:$0xf]
  %v357 = vld [vmem:[%s7 + $0x30] sm:$0xf]
  %v358 = vld [vmem:[%s7 + $0x34] sm:$0xf]
  %v359 = vld [vmem:[%s7 + $0x38] sm:$0xf]
  %v360 = vld [vmem:[%s7 + $0x3c] sm:$0xf]
  %v361 = vld [vmem:[%s8] sm:$0x1]
  %v363 = vperm.slane %v361, 0
  %v381 = vunpack.c.l.b16 %v345
  %v382 = vunpack.c.l.b16 %v346
  %v383 = vunpack.c.l.b16 %v347
  %v384 = vunpack.c.l.b16 %v348
  %v385 = vunpack.c.l.b16 %v349
  %v386 = vunpack.c.l.b16 %v350
  %v387 = vunpack.c.l.b16 %v351
  %v388 = vunpack.c.l.b16 %v352
  %v389 = vunpack.c.l.b16 %v353
  %v390 = vunpack.c.l.b16 %v354
  %v391 = vunpack.c.l.b16 %v355
  %v392 = vunpack.c.l.b16 %v356
  %v393 = vunpack.c.l.b16 %v357
  %v394 = vunpack.c.l.b16 %v358
  %v395 = vunpack.c.l.b16 %v359
  %v396 = vunpack.c.l.b16 %v360
  %v397 = vpack.c.b16 %v382, %v381
  %v398 = vpack.c.b16 %v384, %v383
  %v399 = vpack.c.b16 %v386, %v385
  %v400 = vpack.c.b16 %v388, %v387
  %v401 = vpack.c.b16 %v390, %v389
  %v402 = vpack.c.b16 %v392, %v391
  %v403 = vpack.c.b16 %v394, %v393
  %v404 = vpack.c.b16 %v396, %v395
  %413 = vmatpush.bf16.msra.mxu0 %v404
  %414 = vmatpush.bf16.msra.mxu0 %v403
  %415 = vmatpush.bf16.msra.mxu0 %v402
  %416 = vmatpush.bf16.msra.mxu0 %v401
  %417 = vmatpush.bf16.msra.mxu0 %v400
  %418 = vmatpush.bf16.msra.mxu0 %v399
  %419 = vmatpush.bf16.msra.mxu0 %v398
  %420 = vmatpush.bf16.msra.mxu0 %v397
  %421 = vmatmul.bf16.gmra.mxu0 %v341
  %v422 = vpop.f32.mrf.mxu0
  %v423 = vadd.f32 %v363, %v422
  %v424 = vpop.f32.mrf.mxu0
  %v425 = vadd.f32 %v363, %v424
  %426 = vmatmul.bf16.gmra.mxu0 %v342
  %v427 = vpop.f32.mrf.mxu0
  %v428 = vadd.f32 %v363, %v427
  %v429 = vpop.f32.mrf.mxu0
  %v430 = vadd.f32 %v363, %v429
  %431 = vmatmul.bf16.gmra.mxu0 %v343
  %v432 = vpop.f32.mrf.mxu0
  %v433 = vadd.f32 %v363, %v432
  %v434 = vpop.f32.mrf.mxu0
  %v435 = vadd.f32 %v363, %v434
  %436 = vmatmul.bf16.gmra.mxu0 %v344
  %v437 = vpop.f32.mrf.mxu0
  %v438 = vadd.f32 %v363, %v437
  %v439 = vpop.f32.mrf.mxu0
  %v440 = vadd.f32 %v363, %v439
  %441 = vdwg.mxu0
  %v442 = vtanh.pop %v423
  %v443 = vtanh.pop %v425
  %v444 = vtanh.pop %v428
  %v445 = vtanh.pop %v430
  %v446 = vtanh.pop %v433
  %v447 = vtanh.pop %v435
  %v448 = vtanh.pop %v438
  %v449 = vtanh.pop %v440
  %v450 = vpack.c.bf16 %v442, %v442
  %v451 = vpack.c.bf16 %v443, %v443
  %v452 = vpack.c.bf16 %v444, %v444
  %v453 = vpack.c.bf16 %v445, %v445
  %v454 = vpack.c.bf16 %v446, %v446
  %v455 = vpack.c.bf16 %v447, %v447
  %v456 = vpack.c.bf16 %v448, %v448
  %v457 = vpack.c.bf16 %v449, %v449
  %458 = vst [vmem:[%s9] sm:$0xf] %v450
  %459 = vst [vmem:[%s9 + $0x4] sm:$0xf] %v451
  %460 = vst [vmem:[%s9 + $0x8] sm:$0xf] %v452
  %461 = vst [vmem:[%s9 + $0xc] sm:$0xf] %v453
  %462 = vst [vmem:[%s9 + $0x10] sm:$0xf] %v454
  %463 = vst [vmem:[%s9 + $0x14] sm:$0xf] %v455
  %464 = vst [vmem:[%s9 + $0x18] sm:$0xf] %v456
  %465 = vst [vmem:[%s9 + $0x1c] sm:$0xf] %v457
  // Predicated region
  $region38: #{shared_actor_forward.1} parent=0 // pred_check
    _
  $region39: #{shared_actor_forward.1} parent=0 // pred_check_branch
    %467 = sbr.rel (0) target = $region41
  $region40: #{shared_actor_forward.1} parent=0 // pred_region
    _
  $region41: #{shared_actor_forward.1} parent=0 // pred_fallthru
    _
  // Predicated region
  $region42: #{shared_actor_forward.1} parent=0 // pred_check
    _
  $region43: #{shared_actor_forward.1} parent=0 // pred_check_branch
    %469 = sbr.rel (0) target = $region45
  $region44: #{shared_actor_forward.1} parent=0 // pred_region
    _
  $region45: #{shared_actor_forward.1} parent=0 // pred_fallthru
    _

</llo_original>
